<compile_context>
chip_gen: v5e
topology: v5e:2x2
jax: 0.10.0
libtpu: 0.0.40
codegen_flags: <defaults>
</compile_context>

<pallas_src>
import jax
import jax.numpy as jnp
from jax.experimental import pallas as pl
from jax.experimental.pallas import tpu as pltpu

# ---------------------------------------------------------------------------
# Config (synthetic, mirrors the fields the PyTorch module's __init__ reads)
# ---------------------------------------------------------------------------
D_MODEL            = 32
TEXT_EMBED_DIM     = 32
ACOUSTIC_FEAT_DIM  = 16
VISUAL_FEAT_DIM    = 24
NUM_REG_TARGETS    = 1     # len(config.REGRESSION_TARGETS)
NUM_CLASSES        = 3
USE_REGRESSION     = True
USE_CLASSIFICATION = True

BATCH = 2
SEQ_T, SEQ_A, SEQ_V = 8, 8, 8


# ---------------------------------------------------------------------------
# Fused kernel:
#   mean_x   = mean_s(x)                                   (B, Din_x)   [VPU/XLU]
#   proj_x   = mean_x @ W_x + b_x                          (B, Dm)      [MXU]
#   combined = cat([proj_t, proj_a, proj_v], dim=1)        (B, 3*Dm)    (implicit)
#   out      = combined @ W_head + b_head                  (B, n_out)   [MXU]
# The concat + head matmul is expressed as a sum of three partial matmuls over
# statically sliced, sublane-aligned (Dm = 32) rows of W_head — mathematically
# identical to torch.cat + Linear, and avoids any unaligned lane concatenation.
# ---------------------------------------------------------------------------
def _mult_fused_kernel(text_ref, audio_ref, vision_ref,
                       wt_ref, bt_ref, wa_ref, ba_ref, wv_ref, bv_ref,
                       wh_ref, bh_ref, out_ref):
    dm = wt_ref.shape[1]

    # mean over seq BEFORE the projection (W and b are seq-invariant)
    mt = jnp.mean(text_ref[...],   axis=1)          # (B, Dt)
    ma = jnp.mean(audio_ref[...],  axis=1)          # (B, Da)
    mv = jnp.mean(vision_ref[...], axis=1)          # (B, Dv)

    pt = jnp.dot(mt, wt_ref[...], preferred_element_type=jnp.float32) + bt_ref[...]
    pa = jnp.dot(ma, wa_ref[...], preferred_element_type=jnp.float32) + ba_ref[...]
    pv = jnp.dot(mv, wv_ref[...], preferred_element_type=jnp.float32) + bv_ref[...]

    out = jnp.dot(pt, wh_ref[0 * dm:1 * dm, :], preferred_element_type=jnp.float32)
    out += jnp.dot(pa, wh_ref[1 * dm:2 * dm, :], preferred_element_type=jnp.float32)
    out += jnp.dot(pv, wh_ref[2 * dm:3 * dm, :], preferred_element_type=jnp.float32)
    out_ref[...] = out + bh_ref[...]                # single packed (B, n_out) store


# ---------------------------------------------------------------------------
# Forward wrapper (host-side weight packing + one pallas_call + output split)
# ---------------------------------------------------------------------------
def mult_forward(params, text, audio, vision):
    outputs = {}
    if not (USE_REGRESSION or USE_CLASSIFICATION):
        return outputs

    head_ws, head_bs = [], []
    if USE_REGRESSION:
        head_ws.append(params["w_reg"]); head_bs.append(params["b_reg"])
    if USE_CLASSIFICATION:
        head_ws.append(params["w_cls"]); head_bs.append(params["b_cls"])
    w_head = jnp.concatenate(head_ws, axis=1)       # (3*Dm, n_reg + n_cls)
    b_head = jnp.concatenate(head_bs, axis=1)       # (1,    n_reg + n_cls)

    B = text.shape[0]
    n_out = w_head.shape[1]
    vmem = pl.BlockSpec(memory_space=pltpu.MemorySpace.VMEM)

    packed = pl.pallas_call(
        _mult_fused_kernel,
        out_shape=jax.ShapeDtypeStruct((B, n_out), jnp.float32),
        in_specs=[vmem] * 11,
        out_specs=vmem,
    )(text, audio, vision,
      params["w_t"], params["b_t"],
      params["w_a"], params["b_a"],
      params["w_v"], params["b_v"],
      w_head, b_head)

    col = 0
    if USE_REGRESSION:
        nr = params["w_reg"].shape[1]
        outputs["regression"] = packed[:, col:col + nr]
        col += nr
    if USE_CLASSIFICATION:
        nc = params["w_cls"].shape[1]
        outputs["classification"] = packed[:, col:col + nc]
    return outputs


def init_params(key):
    ks = jax.random.split(key, 10)

    def lin(kw, kb, din, dout):
        bound = 1.0 / jnp.sqrt(din)
        w = jax.random.uniform(kw, (din, dout), jnp.float32, -bound, bound)
        b = jax.random.uniform(kb, (1, dout), jnp.float32, -bound, bound)
        return w, b

    w_t, b_t = lin(ks[0], ks[1], TEXT_EMBED_DIM,    D_MODEL)
    w_a, b_a = lin(ks[2], ks[3], ACOUSTIC_FEAT_DIM, D_MODEL)
    w_v, b_v = lin(ks[4], ks[5], VISUAL_FEAT_DIM,   D_MODEL)
    w_reg, b_reg = lin(ks[6], ks[7], 3 * D_MODEL, NUM_REG_TARGETS)
    w_cls, b_cls = lin(ks[8], ks[9], 3 * D_MODEL, NUM_CLASSES)
    return dict(w_t=w_t, b_t=b_t, w_a=w_a, b_a=b_a, w_v=w_v, b_v=b_v,
                w_reg=w_reg, b_reg=b_reg, w_cls=w_cls, b_cls=b_cls)


if __name__ == "__main__":
    key = jax.random.PRNGKey(0)
    k_p, k_t, k_a, k_v = jax.random.split(key, 4)
    params = init_params(k_p)

    text   = jax.random.normal(k_t, (BATCH, SEQ_T, TEXT_EMBED_DIM),    jnp.float32)
    audio  = jax.random.normal(k_a, (BATCH, SEQ_A, ACOUSTIC_FEAT_DIM), jnp.float32)
    vision = jax.random.normal(k_v, (BATCH, SEQ_V, VISUAL_FEAT_DIM),   jnp.float32)

    out = jax.jit(mult_forward)(params, text, audio, vision)
    out = jax.block_until_ready(out)

    # reference check in plain JAX (same math as the PyTorch forward)
    def ref(p, t, a, v):
        ft = jnp.mean(t @ p["w_t"] + p["b_t"], axis=1)
        fa = jnp.mean(a @ p["w_a"] + p["b_a"], axis=1)
        fv = jnp.mean(v @ p["w_v"] + p["b_v"], axis=1)
        comb = jnp.concatenate([ft, fa, fv], axis=1)
        return {"regression": comb @ p["w_reg"] + p["b_reg"],
                "classification": comb @ p["w_cls"] + p["b_cls"]}

    r = ref(params, text, audio, vision)
    assert out["regression"].shape == (BATCH, NUM_REG_TARGETS)
    assert out["classification"].shape == (BATCH, NUM_CLASSES)
    assert jnp.allclose(out["regression"], r["regression"], atol=1e-4)
    assert jnp.allclose(out["classification"], r["classification"], atol=1e-4)

    print("KERNEL_OK")
</pallas_src>

<mosaic_0001>
module attributes {stable_mosaic.version = 11 : i64} {
  func.func @_mult_fused_kernel(%arg0: memref<2x8x32xf32, #tpu.memory_space<vmem>>, %arg1: memref<2x8x16xf32, #tpu.memory_space<vmem>>, %arg2: memref<2x8x24xf32, #tpu.memory_space<vmem>>, %arg3: memref<32x32xf32, #tpu.memory_space<vmem>>, %arg4: memref<1x32xf32, #tpu.memory_space<vmem>>, %arg5: memref<16x32xf32, #tpu.memory_space<vmem>>, %arg6: memref<1x32xf32, #tpu.memory_space<vmem>>, %arg7: memref<24x32xf32, #tpu.memory_space<vmem>>, %arg8: memref<1x32xf32, #tpu.memory_space<vmem>>, %arg9: memref<96x4xf32, #tpu.memory_space<vmem>>, %arg10: memref<1x4xf32, #tpu.memory_space<vmem>>, %arg11: memref<2x4xf32, #tpu.memory_space<vmem>>) attributes {dimension_semantics = [], scalar_prefetch = 0 : i64, scratch_operands = 0 : i64, tpu.core_type = #tpu.core_type<tc>} {
    %c0 = arith.constant 0 : index
    %c0_0 = arith.constant 0 : index
    %c0_1 = arith.constant 0 : index
    %0 = vector.load %arg0[%c0, %c0_0, %c0_1] : memref<2x8x32xf32, #tpu.memory_space<vmem>>, vector<2x8x32xf32>
    %cst = arith.constant dense<0.000000e+00> : vector<2x32xf32>
    %1 = vector.multi_reduction <add>, %0, %cst [1] : vector<2x8x32xf32> to vector<2x32xf32>
    %cst_2 = arith.constant 8.000000e+00 : f32
    %2 = vector.broadcast %cst_2 : f32 to vector<2x32xf32>
    %3 = arith.divf %1, %2 : vector<2x32xf32>
    %c0_3 = arith.constant 0 : index
    %c0_4 = arith.constant 0 : index
    %c0_5 = arith.constant 0 : index
    %4 = vector.load %arg1[%c0_3, %c0_4, %c0_5] : memref<2x8x16xf32, #tpu.memory_space<vmem>>, vector<2x8x16xf32>
    %cst_6 = arith.constant dense<0.000000e+00> : vector<2x16xf32>
    %5 = vector.multi_reduction <add>, %4, %cst_6 [1] : vector<2x8x16xf32> to vector<2x16xf32>
    %cst_7 = arith.constant 8.000000e+00 : f32
    %6 = vector.broadcast %cst_7 : f32 to vector<2x16xf32>
    %7 = arith.divf %5, %6 : vector<2x16xf32>
    %c0_8 = arith.constant 0 : index
    %c0_9 = arith.constant 0 : index
    %c0_10 = arith.constant 0 : index
    %8 = vector.load %arg2[%c0_8, %c0_9, %c0_10] : memref<2x8x24xf32, #tpu.memory_space<vmem>>, vector<2x8x24xf32>
    %cst_11 = arith.constant dense<0.000000e+00> : vector<2x24xf32>
    %9 = vector.multi_reduction <add>, %8, %cst_11 [1] : vector<2x8x24xf32> to vector<2x24xf32>
    %cst_12 = arith.constant 8.000000e+00 : f32
    %10 = vector.broadcast %cst_12 : f32 to vector<2x24xf32>
    %11 = arith.divf %9, %10 : vector<2x24xf32>
    %c0_13 = arith.constant 0 : index
    %c0_14 = arith.constant 0 : index
    %12 = vector.load %arg3[%c0_13, %c0_14] : memref<32x32xf32, #tpu.memory_space<vmem>>, vector<32x32xf32>
    %cst_15 = arith.constant dense<0.000000e+00> : vector<2x32xf32>
    %13 = tpu.matmul %3, %12, %cst_15 {dimension_numbers = #tpu.dot_dimension_numbers<[1], [0], [0], [1], [0, 0, 1, 1], [], []>} : vector<2x32xf32>, vector<32x32xf32>, vector<2x32xf32> -> vector<2x32xf32>
    %c0_16 = arith.constant 0 : index
    %c0_17 = arith.constant 0 : index
    %14 = vector.load %arg4[%c0_16, %c0_17] : memref<1x32xf32, #tpu.memory_space<vmem>>, vector<1x32xf32>
    %15 = vector.broadcast %14 : vector<1x32xf32> to vector<2x32xf32>
    %16 = arith.addf %13, %15 : vector<2x32xf32>
    %c0_18 = arith.constant 0 : index
    %c0_19 = arith.constant 0 : index
    %17 = vector.load %arg5[%c0_18, %c0_19] : memref<16x32xf32, #tpu.memory_space<vmem>>, vector<16x32xf32>
    %cst_20 = arith.constant dense<0.000000e+00> : vector<2x32xf32>
    %18 = tpu.matmul %7, %17, %cst_20 {dimension_numbers = #tpu.dot_dimension_numbers<[1], [0], [0], [1], [0, 0, 1, 1], [], []>} : vector<2x16xf32>, vector<16x32xf32>, vector<2x32xf32> -> vector<2x32xf32>
    %c0_21 = arith.constant 0 : index
    %c0_22 = arith.constant 0 : index
    %19 = vector.load %arg6[%c0_21, %c0_22] : memref<1x32xf32, #tpu.memory_space<vmem>>, vector<1x32xf32>
    %20 = vector.broadcast %19 : vector<1x32xf32> to vector<2x32xf32>
    %21 = arith.addf %18, %20 : vector<2x32xf32>
    %c0_23 = arith.constant 0 : index
    %c0_24 = arith.constant 0 : index
    %22 = vector.load %arg7[%c0_23, %c0_24] : memref<24x32xf32, #tpu.memory_space<vmem>>, vector<24x32xf32>
    %cst_25 = arith.constant dense<0.000000e+00> : vector<2x32xf32>
    %23 = tpu.matmul %11, %22, %cst_25 {dimension_numbers = #tpu.dot_dimension_numbers<[1], [0], [0], [1], [0, 0, 1, 1], [], []>} : vector<2x24xf32>, vector<24x32xf32>, vector<2x32xf32> -> vector<2x32xf32>
    %c0_26 = arith.constant 0 : index
    %c0_27 = arith.constant 0 : index
    %24 = vector.load %arg8[%c0_26, %c0_27] : memref<1x32xf32, #tpu.memory_space<vmem>>, vector<1x32xf32>
    %25 = vector.broadcast %24 : vector<1x32xf32> to vector<2x32xf32>
    %26 = arith.addf %23, %25 : vector<2x32xf32>
    %c0_28 = arith.constant 0 : index
    %c0_29 = arith.constant 0 : index
    %27 = vector.load %arg9[%c0_28, %c0_29] : memref<96x4xf32, #tpu.memory_space<vmem>>, vector<32x4xf32>
    %cst_30 = arith.constant dense<0.000000e+00> : vector<2x4xf32>
    %28 = tpu.matmul %16, %27, %cst_30 {dimension_numbers = #tpu.dot_dimension_numbers<[1], [0], [0], [1], [0, 0, 1, 1], [], []>} : vector<2x32xf32>, vector<32x4xf32>, vector<2x4xf32> -> vector<2x4xf32>
    %c32 = arith.constant 32 : index
    %c0_31 = arith.constant 0 : index
    %29 = vector.load %arg9[%c32, %c0_31] : memref<96x4xf32, #tpu.memory_space<vmem>>, vector<32x4xf32>
    %cst_32 = arith.constant dense<0.000000e+00> : vector<2x4xf32>
    %30 = tpu.matmul %21, %29, %cst_32 {dimension_numbers = #tpu.dot_dimension_numbers<[1], [0], [0], [1], [0, 0, 1, 1], [], []>} : vector<2x32xf32>, vector<32x4xf32>, vector<2x4xf32> -> vector<2x4xf32>
    %31 = arith.addf %28, %30 : vector<2x4xf32>
    %c64 = arith.constant 64 : index
    %c0_33 = arith.constant 0 : index
    %32 = vector.load %arg9[%c64, %c0_33] : memref<96x4xf32, #tpu.memory_space<vmem>>, vector<32x4xf32>
    %cst_34 = arith.constant dense<0.000000e+00> : vector<2x4xf32>
    %33 = tpu.matmul %26, %32, %cst_34 {dimension_numbers = #tpu.dot_dimension_numbers<[1], [0], [0], [1], [0, 0, 1, 1], [], []>} : vector<2x32xf32>, vector<32x4xf32>, vector<2x4xf32> -> vector<2x4xf32>
    %34 = arith.addf %31, %33 : vector<2x4xf32>
    %c0_35 = arith.constant 0 : index
    %c0_36 = arith.constant 0 : index
    %35 = vector.load %arg10[%c0_35, %c0_36] : memref<1x4xf32, #tpu.memory_space<vmem>>, vector<1x4xf32>
    %36 = vector.broadcast %35 : vector<1x4xf32> to vector<2x4xf32>
    %37 = arith.addf %34, %36 : vector<2x4xf32>
    %c0_37 = arith.constant 0 : index
    %c0_38 = arith.constant 0 : index
    %38 = vector.load %arg11[%c0_37, %c0_38] : memref<2x4xf32, #tpu.memory_space<vmem>>, vector<2x4xf32>
    tpu.vector_store %arg11[%c0_37, %c0_38], %37 {strides = array<i32>} : memref<2x4xf32, #tpu.memory_space<vmem>>, vector<2x4xf32>,
    return
  }
}

</mosaic_0001>

<llo_original>
// kernel: mult_forward.1
$region0: #{mult_forward.1}
  #allocation0 [shape = 'u32[]', space=smem, size = 0x4, offset = 0x4, fixed_abs, tag = 'smem constant byte address 0x4 - core index']
  #allocation1 [shape = 'u32[72,128]{1,0:T(1,128)}', space=vmem, size = 0x9000, scoped, tag = 'internal scratch']
  %s0 = inlined_call_operand.vmem [shape: f32[2,8,32], index: 0, kind: input, shape index: {}]
  %s1 = inlined_call_operand.vmem [shape: f32[2,8,16], index: 1, kind: input, shape index: {}]
  %s2 = inlined_call_operand.vmem [shape: f32[2,8,24], index: 2, kind: input, shape index: {}]
  %s3 = inlined_call_operand.vmem [shape: f32[32,32], index: 3, kind: input, shape index: {}]
  %s4 = inlined_call_operand.vmem [shape: f32[1,32], index: 4, kind: input, shape index: {}]
  %s5 = inlined_call_operand.hbm [shape: f32[16,32], index: 5, kind: input, shape index: {}]
  %s6 = inlined_call_operand.vmem [shape: f32[1,32], index: 6, kind: input, shape index: {}]
  %s7 = inlined_call_operand.vmem [shape: f32[24,32], index: 7, kind: input, shape index: {}]
  %s8 = inlined_call_operand.vmem [shape: f32[1,32], index: 8, kind: input, shape index: {}]
  %s9 = inlined_call_operand.vmem [shape: f32[96,4], index: 9, kind: input, shape index: {}]
  %s10 = inlined_call_operand.vmem [shape: f32[1,4], index: 10, kind: input, shape index: {}]
  %s11 = inlined_call_operand.vmem [shape: f32[2,4], index: 11, kind: output, shape index: {}]
  %s12 = sld [smem:[#allocation0]]
  $region58: #{mult_forward.1} parent=0
    _
  %s14 = ssub.s32 1, %s12
  %s15 = scalar_select 0, %s14, %s12
  $region1: #{mult_forward.1} parent=0
    #allocation2 [shape = 'u8[8192]{0}', space=vmem, size = 0x2000, scoped, tag = 'input window, operand 5, single buffered']
    #allocation3 [shape = 's32[1]{0}', space=sflag, size = 0x4, scoped, tag = 'scoped memory for mult_forward.1']
    %16 = vsyncpa [#allocation3], 0
    // Predicated region
    $region2: #{mult_forward.1} parent=1 // pred_check
      _
    $region3: #{mult_forward.1} parent=1 // pred_check_branch
      %18 = sbr.rel (0) target = $region5
    $region4: #{mult_forward.1} parent=1 // pred_region
      _
    $region5: #{mult_forward.1} parent=1 // pred_fallthru
      _
    // Predicated region
    $region6: #{mult_forward.1} parent=1 // pred_check
      _
    $region7: #{mult_forward.1} parent=1 // pred_check_branch
      %20 = sbr.rel (0) target = $region9
    $region8: #{mult_forward.1} parent=1 // pred_region
      _
    $region9: #{mult_forward.1} parent=1 // pred_fallthru
      _
    // Predicated region
    $region10: #{mult_forward.1} parent=1 // pred_check
      _
    $region11: #{mult_forward.1} parent=1 // pred_check_branch
      %22 = sbr.rel (0) target = $region13
    $region12: #{mult_forward.1} parent=1 // pred_region
      _
    $region13: #{mult_forward.1} parent=1 // pred_fallthru
      _
    // Predicated region
    $region14: #{mult_forward.1} parent=1 // pred_check
      _
    $region15: #{mult_forward.1} parent=1 // pred_check_branch
      %24 = sbr.rel (0) target = $region17
    $region16: #{mult_forward.1} parent=1 // pred_region
      _
    $region17: #{mult_forward.1} parent=1 // pred_fallthru
      _
    // Predicated region
    $region18: #{mult_forward.1} parent=1 // pred_check
      _
    $region19: #{mult_forward.1} parent=1 // pred_check_branch
      %26 = sbr.rel (0) target = $region21
    $region20: #{mult_forward.1} parent=1 // pred_region
      _
    $region21: #{mult_forward.1} parent=1 // pred_fallthru
      _
    // Predicated region
    $region22: #{mult_forward.1} parent=1 // pred_check
      _
    $region23: #{mult_forward.1} parent=1 // pred_check_branch
      %28 = sbr.rel (0) target = $region25
    $region24: #{mult_forward.1} parent=1 // pred_region
      %30 = vsyncadd [#allocation3], 0
      %s31 = sshll.u32 %s5, 4
      %s32 = int_to_ptr.hbm [resolvable:$true] %s31
      %s33 = sshll.u32 [#allocation2], 4
      %s34 = int_to_ptr.vmem [resolvable:$true] %s33
      %39 = dma.hbm_to_vmem [thread:$0]  %s32, 256, %s34, [#allocation3], 128, 128, 8
    $region25: #{mult_forward.1} parent=1 // pred_fallthru
      _
    // Predicated region
    $region26: #{mult_forward.1} parent=1 // pred_check
      _
    $region27: #{mult_forward.1} parent=1 // pred_check_branch
      %41 = sbr.rel (0) target = $region29
    $region28: #{mult_forward.1} parent=1 // pred_region
      _
    $region29: #{mult_forward.1} parent=1 // pred_fallthru
      _
    // Predicated region
    $region30: #{mult_forward.1} parent=1 // pred_check
      _
    $region31: #{mult_forward.1} parent=1 // pred_check_branch
      %43 = sbr.rel (0) target = $region33
    $region32: #{mult_forward.1} parent=1 // pred_region
      _
    $region33: #{mult_forward.1} parent=1 // pred_fallthru
      _
    // Predicated region
    $region34: #{mult_forward.1} parent=1 // pred_check
      _
    $region35: #{mult_forward.1} parent=1 // pred_check_branch
      %45 = sbr.rel (0) target = $region37
    $region36: #{mult_forward.1} parent=1 // pred_region
      _
    $region37: #{mult_forward.1} parent=1 // pred_fallthru
      _
    // Predicated region
    $region38: #{mult_forward.1} parent=1 // pred_check
      _
    $region39: #{mult_forward.1} parent=1 // pred_check_branch
      %47 = sbr.rel (0) target = $region41
    $region40: #{mult_forward.1} parent=1 // pred_region
      _
    $region41: #{mult_forward.1} parent=1 // pred_fallthru
      _
    // Predicated region
    $region42: #{mult_forward.1} parent=1 // pred_check
      _
    $region43: #{mult_forward.1} parent=1 // pred_check_branch
      %49 = sbr.rel (0) target = $region45
    $region44: #{mult_forward.1} parent=1 // pred_region
      _
    $region45: #{mult_forward.1} parent=1 // pred_fallthru
      _
    // Predicated region
    $region46: #{mult_forward.1} parent=1 // pred_check
      _
    $region47: #{mult_forward.1} parent=1 // pred_check_branch
      %51 = sbr.rel (0) target = $region49
    $region48: #{mult_forward.1} parent=1 // pred_region
      %53 = dma.done [#allocation3], 256
    $region49: #{mult_forward.1} parent=1 // pred_fallthru
      _
    %v54 = vld [vmem:[%s0] sm:$0xff]
    %v55 = vld [vmem:[%s0 + $0x8] sm:$0xff]
    %vm56 = vcmask 261120
    %v57 = vsel %vm56, %v54, 0.0
    %v58 = vrot.slane %v57, 4
    %v59 = vadd.f32 %v57, %v58
    %v60 = vrot.slane %v59, 2
    %v61 = vadd.f32 %v59, %v60
    %v62 = vrot.slane %v61, 1
    %v63 = vadd.f32 %v61, %v62
    %v64 = vsel %vm56, %v55, 0.0
    %v65 = vrot.slane %v64, 4
    %v66 = vadd.f32 %v64, %v65
    %v67 = vrot.slane %v66, 2
    %v68 = vadd.f32 %v66, %v67
    %v69 = vrot.slane %v68, 1
    %v70 = vadd.f32 %v68, %v69
    %v71 = vrcp.pop 8.0
    %v72 = vmul.f32 8.0, %v71
    %v73 = vsub.f32 1.0, %v72
    %v74 = vmul.f32 %v71, %v73
    %v75 = vadd.f32 %v71, %v74
    %vm76 = vweird.f32 %v71
    %v77 = vsel %vm76, %v71, %v75
    %v78 = vmul.f32 %v63, %v77
    %v79 = vmul.f32 %v70, %v77
    %v80 = vld [vmem:[%s1] sm:$0xff]
    %v81 = vld [vmem:[%s1 + $0x8] sm:$0xff]
    %vm82 = vcmask 130048
    %v83 = vsel %vm82, %v80, 0.0
    %v84 = vrot.slane %v83, 4
    %v85 = vadd.f32 %v83, %v84
    %v86 = vrot.slane %v85, 2
    %v87 = vadd.f32 %v85, %v86
    %v88 = vrot.slane %v87, 1
    %v89 = vadd.f32 %v87, %v88
    %v90 = vsel %vm82, %v81, 0.0
    %v91 = vrot.slane %v90, 4
    %v92 = vadd.f32 %v90, %v91
    %v93 = vrot.slane %v92, 2
    %v94 = vadd.f32 %v92, %v93
    %v95 = vrot.slane %v94, 1
    %v96 = vadd.f32 %v94, %v95
    %v97 = vmul.f32 %v89, %v77
    %v98 = vmul.f32 %v96, %v77
    %v99 = vld [vmem:[%s2] sm:$0xff]
    %v100 = vld [vmem:[%s2 + $0x8] sm:$0xff]
    %vm101 = vcmask 195584
    %v102 = vsel %vm101, %v99, 0.0
    %v103 = vrot.slane %v102, 4
    %v104 = vadd.f32 %v102, %v103
    %v105 = vrot.slane %v104, 2
    %v106 = vadd.f32 %v104, %v105
    %v107 = vrot.slane %v106, 1
    %v108 = vadd.f32 %v106, %v107
    %v109 = vsel %vm101, %v100, 0.0
    %v110 = vrot.slane %v109, 4
    %v111 = vadd.f32 %v109, %v110
    %v112 = vrot.slane %v111, 2
    %v113 = vadd.f32 %v111, %v112
    %v114 = vrot.slane %v113, 1
    %v115 = vadd.f32 %v113, %v114
    %v116 = vmul.f32 %v108, %v77
    %v117 = vmul.f32 %v115, %v77
    %v118 = vld [vmem:[%s3] sm:$0xff]
    %v119 = vld [vmem:[%s3 + $0x8] sm:$0xff]
    %v120 = vld [vmem:[%s3 + $0x10] sm:$0xff]
    %v121 = vld [vmem:[%s3 + $0x18] sm:$0xff]
    %v122 = vld [vmem:[%s4] sm:$0x1]
    %v124 = vperm.slane %v122, 0
    %vm128 = vcmask 1041409
    %v129 = vsel %vm128, %v79, %v78
    %v130 = vsel %vm56, %v129, 0
    %132 = vmatpush.msra.mxu0 0.0
    %133 = vmatpush.msra.mxu0 0.0
    %134 = vmatpush.msra.mxu0 0.0
    %135 = vmatpush.msra.mxu0 0.0
    %136 = vmatpush.msra.mxu0 0.0
    %137 = vmatpush.msra.mxu0 0.0
    %138 = vmatpush.msra.mxu0 0.0
    %139 = vmatpush.msra.mxu0 0.0
    %140 = vmatpush.msra.mxu0 0.0
    %141 = vmatpush.msra.mxu0 0.0
    %142 = vmatpush.msra.mxu0 0.0
    %143 = vmatpush.msra.mxu0 0.0
    %144 = vmatpush.msra.mxu0 %v121
    %145 = vmatpush.msra.mxu0 %v120
    %146 = vmatpush.msra.mxu0 %v119
    %147 = vmatpush.msra.mxu0 %v118
    %148 = vmatmul.f32.gmra.mxu0 %v130
    %v149 = vpop.f32.mrf.mxu0
    %v150 = vadd.f32 %v124, %v149
    %151 = vdwg.mxu0
    %v152 = vld [vmem:[#allocation2] sm:$0xff]
    %v153 = vld [vmem:[#allocation2 + $0x8] sm:$0xff]
    %v154 = vld [vmem:[%s6] sm:$0x1]
    %v156 = vperm.slane %v154, 0
    %v160 = vsel %vm128, %v98, %v97
    %v161 = vsel %vm82, %v160, 0
    %163 = vmatpush.msra.mxu0 0.0
    %164 = vmatpush.msra.mxu0 0.0
    %165 = vmatpush.msra.mxu0 0.0
    %166 = vmatpush.msra.mxu0 0.0
    %167 = vmatpush.msra.mxu0 0.0
    %168 = vmatpush.msra.mxu0 0.0
    %169 = vmatpush.msra.mxu0 0.0
    %170 = vmatpush.msra.mxu0 0.0
    %171 = vmatpush.msra.mxu0 0.0
    %172 = vmatpush.msra.mxu0 0.0
    %173 = vmatpush.msra.mxu0 0.0
    %174 = vmatpush.msra.mxu0 0.0
    %175 = vmatpush.msra.mxu0 0.0
    %176 = vmatpush.msra.mxu0 0.0
    %177 = vmatpush.msra.mxu0 %v153
    %178 = vmatpush.msra.mxu0 %v152
    %179 = vmatmul.f32.gmra.mxu0 %v161
    %v180 = vpop.f32.mrf.mxu0
    %v181 = vadd.f32 %v156, %v180
    %182 = vdwg.mxu0
    %v183 = vld [vmem:[%s7] sm:$0xff]
    %v184 = vld [vmem:[%s7 + $0x8] sm:$0xff]
    %v185 = vld [vmem:[%s7 + $0x10] sm:$0xff]
    %v186 = vld [vmem:[%s8] sm:$0x1]
    %v188 = vperm.slane %v186, 0
    %v192 = vsel %vm128, %v117, %v116
    %v193 = vsel %vm101, %v192, 0
    %195 = vmatpush.msra.mxu0 0.0
    %196 = vmatpush.msra.mxu0 0.0
    %197 = vmatpush.msra.mxu0 0.0
    %198 = vmatpush.msra.mxu0 0.0
    %199 = vmatpush.msra.mxu0 0.0
    %200 = vmatpush.msra.mxu0 0.0
    %201 = vmatpush.msra.mxu0 0.0
    %202 = vmatpush.msra.mxu0 0.0
    %203 = vmatpush.msra.mxu0 0.0
    %204 = vmatpush.msra.mxu0 0.0
    %205 = vmatpush.msra.mxu0 0.0
    %206 = vmatpush.msra.mxu0 0.0
    %207 = vmatpush.msra.mxu0 0.0
    %208 = vmatpush.msra.mxu0 %v185
    %209 = vmatpush.msra.mxu0 %v184
    %210 = vmatpush.msra.mxu0 %v183
    %211 = vmatmul.f32.gmra.mxu0 %v193
    %v212 = vpop.f32.mrf.mxu0
    %v213 = vadd.f32 %v188, %v212
    %214 = vdwg.mxu0
    %v215 = vld [vmem:[%s9] sm:$0xff]
    %v216 = vld [vmem:[%s9 + $0x8] sm:$0xff]
    %v217 = vld [vmem:[%s9 + $0x10] sm:$0xff]
    %v218 = vld [vmem:[%s9 + $0x18] sm:$0xff]
    %v219 = vld [vmem:[%s9 + $0x20] sm:$0xff]
    %v220 = vld [vmem:[%s9 + $0x28] sm:$0xff]
    %v221 = vld [vmem:[%s9 + $0x30] sm:$0xff]
    %v222 = vld [vmem:[%s9 + $0x38] sm:$0xff]
    %v224 = vsel %vm56, %v181, 0
    %226 = vmatpush.msra.mxu0 0.0
    %227 = vmatpush.msra.mxu0 0.0
    %228 = vmatpush.msra.mxu0 0.0
    %229 = vmatpush.msra.mxu0 0.0
    %230 = vmatpush.msra.mxu0 0.0
    %231 = vmatpush.msra.mxu0 0.0
    %232 = vmatpush.msra.mxu0 0.0
    %233 = vmatpush.msra.mxu0 0.0
    %234 = vmatpush.msra.mxu0 0.0
    %235 = vmatpush.msra.mxu0 0.0
    %236 = vmatpush.msra.mxu0 0.0
    %237 = vmatpush.msra.mxu0 0.0
    %238 = vmatpush.msra.mxu0 %v222
    %239 = vmatpush.msra.mxu0 %v221
    %240 = vmatpush.msra.mxu0 %v220
    %241 = vmatpush.msra.mxu0 %v219
    %242 = vmatmul.f32.gmra.mxu0 %v224
    %v243 = vpop.f32.mrf.mxu0
    %v244 = vadd.f32 0.0, %v243
    %245 = vdwg.mxu0
    %v247 = vsel %vm56, %v150, 0
    %249 = vmatpush.msra.mxu0 0.0
    %250 = vmatpush.msra.mxu0 0.0
    %251 = vmatpush.msra.mxu0 0.0
    %252 = vmatpush.msra.mxu0 0.0
    %253 = vmatpush.msra.mxu0 0.0
    %254 = vmatpush.msra.mxu0 0.0
    %255 = vmatpush.msra.mxu0 0.0
    %256 = vmatpush.msra.mxu0 0.0
    %257 = vmatpush.msra.mxu0 0.0
    %258 = vmatpush.msra.mxu0 0.0
    %259 = vmatpush.msra.mxu0 0.0
    %260 = vmatpush.msra.mxu0 0.0
    %261 = vmatpush.msra.mxu0 %v218
    %262 = vmatpush.msra.mxu0 %v217
    %263 = vmatpush.msra.mxu0 %v216
    %264 = vmatpush.msra.mxu0 %v215
    %265 = vmatmul.f32.gmra.mxu0 %v247
    %v266 = vpop.f32.mrf.mxu0
    %v267 = vadd.f32 %v244, %v266
    %268 = vdwg.mxu0
    %v269 = vld [vmem:[%s9 + $0x40] sm:$0xff]
    %v270 = vld [vmem:[%s9 + $0x48] sm:$0xff]
    %v271 = vld [vmem:[%s9 + $0x50] sm:$0xff]
    %v272 = vld [vmem:[%s9 + $0x58] sm:$0xff]
    %v274 = vsel %vm56, %v213, 0
    %276 = vmatpush.msra.mxu0 0.0
    %277 = vmatpush.msra.mxu0 0.0
    %278 = vmatpush.msra.mxu0 0.0
    %279 = vmatpush.msra.mxu0 0.0
    %280 = vmatpush.msra.mxu0 0.0
    %281 = vmatpush.msra.mxu0 0.0
    %282 = vmatpush.msra.mxu0 0.0
    %283 = vmatpush.msra.mxu0 0.0
    %284 = vmatpush.msra.mxu0 0.0
    %285 = vmatpush.msra.mxu0 0.0
    %286 = vmatpush.msra.mxu0 0.0
    %287 = vmatpush.msra.mxu0 0.0
    %288 = vmatpush.msra.mxu0 %v272
    %289 = vmatpush.msra.mxu0 %v271
    %290 = vmatpush.msra.mxu0 %v270
    %291 = vmatpush.msra.mxu0 %v269
    %292 = vmatmul.f32.gmra.mxu0 %v274
    %v293 = vpop.f32.mrf.mxu0
    %v294 = vadd.f32 0.0, %v293
    %295 = vdwg.mxu0
    %v296 = vadd.f32 %v267, %v294
    %v297 = vld [vmem:[%s10] sm:$0x1]
    %v299 = vperm.slane %v297, 0
    %v301 = vadd.f32 %v296, %v299
    %vm302 = vcmask 25600
    %303 = vst.msk [vmem:[%s11] sm:$0x3] %vm302, %v301
    // Predicated region
    $region50: #{mult_forward.1} parent=1 // pred_check
      _
    $region51: #{mult_forward.1} parent=1 // pred_check_branch
      %305 = sbr.rel (0) target = $region53
    $region52: #{mult_forward.1} parent=1 // pred_region
      _
    $region53: #{mult_forward.1} parent=1 // pred_fallthru
      _
    // Predicated region
    $region54: #{mult_forward.1} parent=1 // pred_check
      _
    $region55: #{mult_forward.1} parent=1 // pred_check_branch
      %307 = sbr.rel (0) target = $region57
    $region56: #{mult_forward.1} parent=1 // pred_region
      _
    $region57: #{mult_forward.1} parent=1 // pred_fallthru
      _
    %308 = vsyncpa [#allocation3], 1

</llo_original>
